<compile_context>
chip_gen: v7x
topology: tpu7x:2x2x1
jax: 0.10.0
libtpu: 0.0.40
codegen_flags: <defaults>
</compile_context>

<pallas_src>
import functools

import jax
import jax.numpy as jnp
from jax.experimental import pallas as pl
from jax.experimental.pallas import tpu as pltpu

EPS = 1e-6  # timm / iBOT ViT LayerNorm eps


def _layernorm(x, w, b):
    # x: [..., D] float32 ;  w, b: [1, D] float32
    mu = jnp.mean(x, axis=-1, keepdims=True)
    var = jnp.mean((x - mu) ** 2, axis=-1, keepdims=True)
    return (x - mu) * jax.lax.rsqrt(var + EPS) * w + b


def _pick_batch_tile(B, max_bt):
    # Largest divisor of B that is <= max_bt.  (On v7x, prefer configs with
    # B // bt >= 2 so both TensorCores get work; for real batch sizes this
    # holds automatically.)
    bt = 1
    for d in range(1, min(B, max_bt) + 1):
        if B % d == 0:
            bt = d
    return bt


def _vmem_limit_bytes():
    # Stay inside physical VMEM (64 MiB on v7x, 128 MiB on v5e/v6e) with
    # headroom for compiler scratch; fall back to a conservative value.
    try:
        cap = int(pltpu.get_tpu_info().vmem_capacity_bytes)
    except Exception:
        cap = 64 * 1024 * 1024
    return int(min(cap * 3 // 4, 100 * 1024 * 1024))


# --------------------- patch-embed + CLS + pos-embed kernel ------------------


def embed_kernel(xp_ref, w_ref, b_ref, cls_ref, pos_ref, o_ref):
    # One batch tile per grid step.
    #   xp : [bt, N, C*P*P] bf16 patches   w  : [C*P*P, D] bf16
    #   b  : [1, D] f32 conv bias          cls: [1, D] f32
    #   pos: [T, D] f32 (T = N + 1)        o  : [bt, T, D] bf16 tokens
    pos = pos_ref[...]
    cls_row = (cls_ref[...] + pos[0:1, :]).astype(o_ref.dtype)
    pos_patch = pos[1:, :]
    bias = b_ref[...]
    w = w_ref[...]
    bt = xp_ref.shape[0]
    for s in range(bt):
        tok = jnp.dot(xp_ref[s], w, preferred_element_type=jnp.float32) + bias
        o_ref[s, 0:1, :] = cls_row
        o_ref[s, 1:, :] = (tok + pos_patch).astype(o_ref.dtype)


def run_embed(xp, w, b, cls_tok, pos, *, max_batch_tile=4):
    B, N, CPP = xp.shape
    D = w.shape[1]
    T = pos.shape[0]
    bt = _pick_batch_tile(B, max_batch_tile)
    return pl.pallas_call(
        embed_kernel,
        grid=(B // bt,),
        in_specs=[
            pl.BlockSpec((bt, N, CPP), lambda i: (i, 0, 0)),
            pl.BlockSpec((CPP, D), lambda i: (0, 0)),
            pl.BlockSpec((1, D), lambda i: (0, 0)),
            pl.BlockSpec((1, D), lambda i: (0, 0)),
            pl.BlockSpec((T, D), lambda i: (0, 0)),
        ],
        out_specs=pl.BlockSpec((bt, T, D), lambda i: (i, 0, 0)),
        out_shape=jax.ShapeDtypeStruct((B, T, D), jnp.bfloat16),
        compiler_params=pltpu.CompilerParams(
            dimension_semantics=("parallel",),
            vmem_limit_bytes=_vmem_limit_bytes()),
    )(xp, w, b, cls_tok, pos)


# --------------------- fused transformer-stack kernel ------------------------


def vit_blocks_kernel(x_ref,
                      ln1w_ref, ln1b_ref,
                      wqkv_ref, bqkv_ref,
                      wp_ref, bp_ref,
                      ln2w_ref, ln2b_ref,
                      w1_ref, b1_ref, w2_ref, b2_ref,
                      lnfw_ref, lnfb_ref,
                      cls_ref, xs_ref, *, num_heads):
    # grid = (batch_tiles, depth); one batch tile per batch step, one layer
    # per depth step.  Weights are DMA'd once per (batch tile, layer).
    layer = pl.program_id(1)
    bt, T, D = xs_ref.shape
    H = num_heads
    dh = D // H

    @pl.when(layer == 0)
    def _init():
        # Load this batch tile's tokens into the f32 residual-stream scratch.
        xs_ref[...] = x_ref[...].astype(jnp.float32)

    # Hoist per-layer weight loads out of the per-sample loop.
    ln1w, ln1b = ln1w_ref[...], ln1b_ref[...]
    wqkv, bqkv = wqkv_ref[...], bqkv_ref[...]
    wp, bp = wp_ref[...], bp_ref[...]
    ln2w, ln2b = ln2w_ref[...], ln2b_ref[...]
    w1, b1 = w1_ref[...], b1_ref[...]
    w2, b2 = w2_ref[...], b2_ref[...]

    def block(x):                                         # x: [T, D] f32
        # ------------------------------ MHSA ---------------------------------
        # (1/sqrt(dh) is pre-folded into Wq / bq.)
        h = _layernorm(x, ln1w, ln1b).astype(jnp.bfloat16)
        qkv = jnp.dot(h, wqkv, preferred_element_type=jnp.float32) + bqkv
        qb = qkv[:, 0:D].astype(jnp.bfloat16)
        kb = qkv[:, D:2 * D].astype(jnp.bfloat16)
        vb = qkv[:, 2 * D:3 * D].astype(jnp.bfloat16)

        av_parts = []
        for hh in range(H):
            lo = hh * dh
            s = jax.lax.dot_general(                      # q @ k.T, no transpose op
                qb[:, lo:lo + dh], kb[:, lo:lo + dh],
                (((1,), (1,)), ((), ())),
                preferred_element_type=jnp.float32)       # [T, T]
            s = s - jnp.max(s, axis=-1, keepdims=True)
            p = jnp.exp(s)
            p = p * pl.reciprocal(jnp.sum(p, axis=-1, keepdims=True),
                                  approx=True)
            av_parts.append(
                jnp.dot(p.astype(jnp.bfloat16), vb[:, lo:lo + dh],
                        preferred_element_type=jnp.float32
                        ).astype(jnp.bfloat16))           # [T, dh] bf16
        av = jnp.concatenate(av_parts, axis=-1)           # [T, D] bf16 (merge heads)
        # Single full-K output projection (wp == Wproj.T, shape [D, D]).
        attn = jnp.dot(av, wp, preferred_element_type=jnp.float32) + bp
        x = x + attn

        # ------------------------------ MLP ----------------------------------
        h2 = _layernorm(x, ln2w, ln2b).astype(jnp.bfloat16)
        m = jnp.dot(h2, w1, preferred_element_type=jnp.float32) + b1
        m = jax.nn.gelu(m, approximate=False)             # nn.GELU (exact erf)
        m = jnp.dot(m.astype(jnp.bfloat16), w2,
                    preferred_element_type=jnp.float32) + b2
        return x + m

    new_xs = []
    for smp in range(bt):                                 # static, small unroll
        xn = block(xs_ref[smp])
        xs_ref[smp] = xn
        new_xs.append(xn)

    @pl.when(layer == pl.num_programs(1) - 1)
    def _final():
        # Final LayerNorm applied only to the CLS rows (all the forward returns).
        lnfw, lnfb = lnfw_ref[...], lnfb_ref[...]
        for smp in range(bt):
            cls = _layernorm(new_xs[smp][0:1, :], lnfw, lnfb)
            cls_ref[smp] = cls.astype(cls_ref.dtype)


def run_vit_blocks(tokens, params, *, num_heads, max_batch_tile=4):
    B, T, D = tokens.shape
    depth = params['wqkv'].shape[0]
    Dm = params['w1'].shape[-1]
    bt = _pick_batch_tile(B, max_batch_tile)

    xw = lambda b, l: (b, 0, 0)
    w3 = lambda b, l: (l, 0, 0)
    f2 = lambda b, l: (0, 0)

    in_specs = [
        pl.BlockSpec((bt, T, D), xw),             # tokens (bf16)
        pl.BlockSpec((None, 1, D), w3),           # ln1_w
        pl.BlockSpec((None, 1, D), w3),           # ln1_b
        pl.BlockSpec((None, D, 3 * D), w3),       # wqkv (fused, q pre-scaled)
        pl.BlockSpec((None, 1, 3 * D), w3),       # bqkv
        pl.BlockSpec((None, D, D), w3),           # wp (full Wproj.T)
        pl.BlockSpec((None, 1, D), w3),           # bp
        pl.BlockSpec((None, 1, D), w3),           # ln2_w
        pl.BlockSpec((None, 1, D), w3),           # ln2_b
        pl.BlockSpec((None, D, Dm), w3),          # w1
        pl.BlockSpec((None, 1, Dm), w3),          # b1
        pl.BlockSpec((None, Dm, D), w3),          # w2
        pl.BlockSpec((None, 1, D), w3),           # b2
        pl.BlockSpec((1, D), f2),                 # final ln w
        pl.BlockSpec((1, D), f2),                 # final ln b
    ]

    kernel = functools.partial(vit_blocks_kernel, num_heads=num_heads)
    out = pl.pallas_call(
        kernel,
        grid=(B // bt, depth),
        in_specs=in_specs,
        out_specs=pl.BlockSpec((bt, 1, D), xw),
        out_shape=jax.ShapeDtypeStruct((B, 1, D), jnp.float32),
        scratch_shapes=[pltpu.VMEM((bt, T, D), jnp.float32)],
        compiler_params=pltpu.CompilerParams(
            dimension_semantics=("parallel", "arbitrary"),
            vmem_limit_bytes=_vmem_limit_bytes()),
    )(tokens,
      params['ln1_w'], params['ln1_b'],
      params['wqkv'], params['bqkv'],
      params['wp'], params['bp'],
      params['ln2_w'], params['ln2_b'],
      params['w1'], params['b1'], params['w2'], params['b2'],
      params['lnf_w'], params['lnf_b'])
    return out[:, 0, :]                                    # [B, D]


# ------------------------------ model glue -----------------------------------


def init_params(key, *, C, P, D, depth, num_heads, mlp_ratio, num_patches):
    def rand(k, shape, std=0.02):
        # TODO(synk): PyTorch uses trunc_normal_; plain normal is equivalent
        # structurally for a synthetic forward-pass check.
        return std * jax.random.normal(k, shape, jnp.float32)

    T = num_patches + 1
    Dm = D * mlp_ratio
    dh = D // num_heads
    scale = 1.0 / (dh ** 0.5)
    ks = jax.random.split(key, 7)

    # Fused QKV weight; the 1/sqrt(dh) attention scale is folded into the Wq
    # (and bq) columns at parameter-prep time so the kernel never scales q.
    # When loading real timm/iBOT weights, fold the scale the same way and
    # store proj weights transposed ([D_in, D_out]).
    wqkv = rand(ks[3], (depth, D, 3 * D))
    wqkv = wqkv.at[:, :, :D].multiply(scale)
    bqkv = jnp.zeros((depth, 1, 3 * D), jnp.float32)   # scaled bq is still 0

    return {
        'patch_w': rand(ks[0], (C * P * P, D)).astype(jnp.bfloat16),
        'patch_b': jnp.zeros((1, D), jnp.float32),
        'cls_token': rand(ks[1], (1, D)),
        'pos_embed': rand(ks[2], (T, D)),
        'ln1_w': jnp.ones((depth, 1, D), jnp.float32),
        'ln1_b': jnp.zeros((depth, 1, D), jnp.float32),
        'wqkv': wqkv.astype(jnp.bfloat16),
        'bqkv': bqkv,
        'wp': rand(ks[4], (depth, D, D)).astype(jnp.bfloat16),   # Wproj.T
        'bp': jnp.zeros((depth, 1, D), jnp.float32),
        'ln2_w': jnp.ones((depth, 1, D), jnp.float32),
        'ln2_b': jnp.zeros((depth, 1, D), jnp.float32),
        'w1': rand(ks[5], (depth, D, Dm)).astype(jnp.bfloat16),
        'b1': jnp.zeros((depth, 1, Dm), jnp.float32),
        'w2': rand(ks[6], (depth, Dm, D)).astype(jnp.bfloat16),
        'b2': jnp.zeros((depth, 1, D), jnp.float32),
        'lnf_w': jnp.ones((1, D), jnp.float32),
        'lnf_b': jnp.zeros((1, D), jnp.float32),
    }


def encoder_ibot_forward(x_nchw, params, *, patch_size, num_heads,
                         max_batch_tile=4):
    """EncoderIBOT.forward(x) with default args (returns CLS token [B, D])."""
    B, C, Hh, Ww = x_nchw.shape
    P = patch_size
    Hp, Wp = Hh // P, Ww // P
    # Conv2d(C, D, P, stride=P).flatten(2).transpose(1, 2) == patch matmul.
    xp = x_nchw.reshape(B, C, Hp, P, Wp, P)
    xp = xp.transpose(0, 2, 4, 1, 3, 5).reshape(B, Hp * Wp, C * P * P)
    xp = xp.astype(jnp.bfloat16)      # halve embed-kernel HBM read traffic

    tokens = run_embed(xp, params['patch_w'], params['patch_b'],
                       params['cls_token'], params['pos_embed'],
                       max_batch_tile=max_batch_tile)      # [B,T,D] bf16
    return run_vit_blocks(tokens, params, num_heads=num_heads,
                          max_batch_tile=max_batch_tile)   # [B, D] f32
    # TODO(synk): pretrained timm weight loading and the mean/std attributes
    # are not part of the forward compute and are intentionally not reproduced.


# -------------------------------- main ---------------------------------------

if __name__ == "__main__":
    key = jax.random.PRNGKey(0)
    k_x, k_p = jax.random.split(key)

    # Small synthetic ViT config consistent with the module's structure.
    B, C, Hh, Ww = 2, 3, 16, 16
    P, D, depth, heads, mlp_ratio = 8, 32, 2, 4, 4
    num_patches = (Hh // P) * (Ww // P)

    x = jax.random.normal(k_x, (B, C, Hh, Ww), jnp.float32)
    params = init_params(k_p, C=C, P=P, D=D, depth=depth, num_heads=heads,
                         mlp_ratio=mlp_ratio, num_patches=num_patches)

    out = encoder_ibot_forward(x, params, patch_size=P, num_heads=heads)
    out = jax.block_until_ready(out)

    assert out.shape == (B, D), out.shape
    assert bool(jnp.all(jnp.isfinite(out)))
    print("KERNEL_OK")
</pallas_src>

<mosaic_0001>
module attributes {stable_mosaic.version = 11 : i64} {
  func.func @embed_kernel(%arg0: i32, %arg1: memref<2x4x192xbf16, #tpu.memory_space<vmem>>, %arg2: memref<192x32xbf16, #tpu.memory_space<vmem>>, %arg3: memref<1x32xf32, #tpu.memory_space<vmem>>, %arg4: memref<1x32xf32, #tpu.memory_space<vmem>>, %arg5: memref<5x32xf32, #tpu.memory_space<vmem>>, %arg6: memref<2x5x32xbf16, #tpu.memory_space<vmem>>) attributes {dimension_semantics = [#tpu.dimension_semantics<parallel>], iteration_bounds = array<i64: 1>, scalar_prefetch = 0 : i64, scratch_operands = 0 : i64, tpu.core_type = #tpu.core_type<tc>, window_params = [{transform_indices = @transform_0, window_bounds = array<i64: 2, 4, 192>}, {pipeline_mode = #tpu.pipeline_mode<synchronous>, transform_indices = @transform_1, window_bounds = array<i64: 192, 32>}, {pipeline_mode = #tpu.pipeline_mode<synchronous>, transform_indices = @transform_2, window_bounds = array<i64: 1, 32>}, {pipeline_mode = #tpu.pipeline_mode<synchronous>, transform_indices = @transform_3, window_bounds = array<i64: 1, 32>}, {pipeline_mode = #tpu.pipeline_mode<synchronous>, transform_indices = @transform_4, window_bounds = array<i64: 5, 32>}, {transform_indices = @transform_5, window_bounds = array<i64: 2, 5, 32>}]} {
    %c0 = arith.constant 0 : index
    %c0_0 = arith.constant 0 : index
    %0 = vector.load %arg5[%c0, %c0_0] : memref<5x32xf32, #tpu.memory_space<vmem>>, vector<5x32xf32>
    %c0_1 = arith.constant 0 : index
    %c0_2 = arith.constant 0 : index
    %1 = vector.load %arg4[%c0_1, %c0_2] : memref<1x32xf32, #tpu.memory_space<vmem>>, vector<1x32xf32>
    %2 = vector.extract_strided_slice %0 {offsets = [0, 0], sizes = [1, 32], strides = [1, 1]} : vector<5x32xf32> to vector<1x32xf32>
    %3 = arith.addf %1, %2 : vector<1x32xf32>
    %4 = arith.truncf %3 : vector<1x32xf32> to vector<1x32xbf16>
    %5 = vector.extract_strided_slice %0 {offsets = [1, 0], sizes = [4, 32], strides = [1, 1]} : vector<5x32xf32> to vector<4x32xf32>
    %c0_3 = arith.constant 0 : index
    %c0_4 = arith.constant 0 : index
    %6 = vector.load %arg3[%c0_3, %c0_4] : memref<1x32xf32, #tpu.memory_space<vmem>>, vector<1x32xf32>
    %c0_5 = arith.constant 0 : index
    %c0_6 = arith.constant 0 : index
    %7 = vector.load %arg2[%c0_5, %c0_6] : memref<192x32xbf16, #tpu.memory_space<vmem>>, vector<192x32xbf16>
    %c0_7 = arith.constant 0 : index
    %c0_8 = arith.constant 0 : index
    %c0_9 = arith.constant 0 : index
    %8 = vector.load %arg1[%c0_7, %c0_8, %c0_9] : memref<2x4x192xbf16, #tpu.memory_space<vmem>>, vector<1x4x192xbf16>
    %9 = vector.shape_cast %8 : vector<1x4x192xbf16> to vector<4x192xbf16>
    %cst = arith.constant dense<0.000000e+00> : vector<4x32xf32>
    %10 = tpu.matmul %9, %7, %cst {dimension_numbers = #tpu.dot_dimension_numbers<[1], [0], [0], [1], [0, 0, 1, 1], [], []>} : vector<4x192xbf16>, vector<192x32xbf16>, vector<4x32xf32> -> vector<4x32xf32>
    %11 = vector.broadcast %6 : vector<1x32xf32> to vector<4x32xf32>
    %12 = arith.addf %10, %11 : vector<4x32xf32>
    %c0_10 = arith.constant 0 : index
    %c0_11 = arith.constant 0 : index
    %c0_12 = arith.constant 0 : index
    %13 = vector.load %arg6[%c0_10, %c0_11, %c0_12] : memref<2x5x32xbf16, #tpu.memory_space<vmem>>, vector<1x1x32xbf16>
    %14 = vector.shape_cast %13 : vector<1x1x32xbf16> to vector<1x32xbf16>
    %15 = vector.shape_cast %4 : vector<1x32xbf16> to vector<1x1x32xbf16>
    tpu.vector_store %arg6[%c0_10, %c0_11, %c0_12], %15 {strides = array<i32>} : memref<2x5x32xbf16, #tpu.memory_space<vmem>>, vector<1x1x32xbf16>,
    %16 = arith.addf %12, %5 : vector<4x32xf32>
    %17 = arith.truncf %16 : vector<4x32xf32> to vector<4x32xbf16>
    %c0_13 = arith.constant 0 : index
    %c1 = arith.constant 1 : index
    %c0_14 = arith.constant 0 : index
    %18 = vector.load %arg6[%c0_13, %c1, %c0_14] : memref<2x5x32xbf16, #tpu.memory_space<vmem>>, vector<1x4x32xbf16>
    %19 = vector.shape_cast %18 : vector<1x4x32xbf16> to vector<4x32xbf16>
    %20 = vector.shape_cast %17 : vector<4x32xbf16> to vector<1x4x32xbf16>
    tpu.vector_store %arg6[%c0_13, %c1, %c0_14], %20 {strides = array<i32>} : memref<2x5x32xbf16, #tpu.memory_space<vmem>>, vector<1x4x32xbf16>,
    %c1_15 = arith.constant 1 : index
    %c0_16 = arith.constant 0 : index
    %c0_17 = arith.constant 0 : index
    %21 = vector.load %arg1[%c1_15, %c0_16, %c0_17] : memref<2x4x192xbf16, #tpu.memory_space<vmem>>, vector<1x4x192xbf16>
    %22 = vector.shape_cast %21 : vector<1x4x192xbf16> to vector<4x192xbf16>
    %cst_18 = arith.constant dense<0.000000e+00> : vector<4x32xf32>
    %23 = tpu.matmul %22, %7, %cst_18 {dimension_numbers = #tpu.dot_dimension_numbers<[1], [0], [0], [1], [0, 0, 1, 1], [], []>} : vector<4x192xbf16>, vector<192x32xbf16>, vector<4x32xf32> -> vector<4x32xf32>
    %24 = vector.broadcast %6 : vector<1x32xf32> to vector<4x32xf32>
    %25 = arith.addf %23, %24 : vector<4x32xf32>
    %c1_19 = arith.constant 1 : index
    %c0_20 = arith.constant 0 : index
    %c0_21 = arith.constant 0 : index
    %26 = vector.load %arg6[%c1_19, %c0_20, %c0_21] : memref<2x5x32xbf16, #tpu.memory_space<vmem>>, vector<1x1x32xbf16>
    %27 = vector.shape_cast %26 : vector<1x1x32xbf16> to vector<1x32xbf16>
    %28 = vector.shape_cast %4 : vector<1x32xbf16> to vector<1x1x32xbf16>
    tpu.vector_store %arg6[%c1_19, %c0_20, %c0_21], %28 {strides = array<i32>} : memref<2x5x32xbf16, #tpu.memory_space<vmem>>, vector<1x1x32xbf16>,
    %29 = arith.addf %25, %5 : vector<4x32xf32>
    %30 = arith.truncf %29 : vector<4x32xf32> to vector<4x32xbf16>
    %c1_22 = arith.constant 1 : index
    %c1_23 = arith.constant 1 : index
    %c0_24 = arith.constant 0 : index
    %31 = vector.load %arg6[%c1_22, %c1_23, %c0_24] : memref<2x5x32xbf16, #tpu.memory_space<vmem>>, vector<1x4x32xbf16>
    %32 = vector.shape_cast %31 : vector<1x4x32xbf16> to vector<4x32xbf16>
    %33 = vector.shape_cast %30 : vector<4x32xbf16> to vector<1x4x32xbf16>
    tpu.vector_store %arg6[%c1_22, %c1_23, %c0_24], %33 {strides = array<i32>} : memref<2x5x32xbf16, #tpu.memory_space<vmem>>, vector<1x4x32xbf16>,
    return
  }
  func.func @transform_0(%arg0: i32) -> (i32, i32, i32) {
    %c0_i32 = arith.constant 0 : i32
    %c0_i32_0 = arith.constant 0 : i32
    %c0_i32_1 = arith.constant 0 : i32
    return %arg0, %c0_i32, %c0_i32_0 : i32, i32, i32
  }
  func.func @transform_1(%arg0: i32) -> (i32, i32) {
    %c0_i32 = arith.constant 0 : i32
    %c0_i32_0 = arith.constant 0 : i32
    %c0_i32_1 = arith.constant 0 : i32
    return %c0_i32, %c0_i32_0 : i32, i32
  }
  func.func @transform_2(%arg0: i32) -> (i32, i32) {
    %c0_i32 = arith.constant 0 : i32
    %c0_i32_0 = arith.constant 0 : i32
    %c0_i32_1 = arith.constant 0 : i32
    return %c0_i32, %c0_i32_0 : i32, i32
  }
  func.func @transform_3(%arg0: i32) -> (i32, i32) {
    %c0_i32 = arith.constant 0 : i32
    %c0_i32_0 = arith.constant 0 : i32
    %c0_i32_1 = arith.constant 0 : i32
    return %c0_i32, %c0_i32_0 : i32, i32
  }
  func.func @transform_4(%arg0: i32) -> (i32, i32) {
    %c0_i32 = arith.constant 0 : i32
    %c0_i32_0 = arith.constant 0 : i32
    %c0_i32_1 = arith.constant 0 : i32
    return %c0_i32, %c0_i32_0 : i32, i32
  }
  func.func @transform_5(%arg0: i32) -> (i32, i32, i32) {
    %c0_i32 = arith.constant 0 : i32
    %c0_i32_0 = arith.constant 0 : i32
    %c0_i32_1 = arith.constant 0 : i32
    return %arg0, %c0_i32, %c0_i32_0 : i32, i32, i32
  }
}

</mosaic_0001>

<llo_original>
// kernel: tpu_custom_call.1
$region0: #{tpu_custom_call.1}
  #allocation0 [shape = 'u32[]', space=smem, size = 0x4, offset = 0x4, fixed_abs, tag = 'smem constant byte address 0x4 - core index']
  #allocation1 [shape = 'u32[144,128]{1,0:T(1,128)}', space=vmem, size = 0x12000, scoped, tag = 'internal scratch']
  %s0 = inlined_call_operand.vmem [shape: bf16[2,4,192], index: 0, kind: input, shape index: {}]
  %s1 = inlined_call_operand.vmem [shape: bf16[192,32], index: 1, kind: input, shape index: {}]
  %s2 = inlined_call_operand.vmem [shape: f32[1,32], index: 2, kind: input, shape index: {}]
  %s3 = inlined_call_operand.vmem [shape: f32[1,32], index: 3, kind: input, shape index: {}]
  %s4 = inlined_call_operand.vmem [shape: f32[5,32], index: 4, kind: input, shape index: {}]
  %s5 = inlined_call_operand.vmem [shape: bf16[2,5,32], index: 5, kind: output, shape index: {}]
  %s6 = sld [smem:[#allocation0]]
  $region30: #{tpu_custom_call.1} parent=0
    _
  %s8 = ssub.s32 1, %s6
  %s9 = scalar_select 0, %s8, %s6
  // Predicated region
  $region2: #{tpu_custom_call.1} parent=0 // pred_check
    _
  $region3: #{tpu_custom_call.1} parent=0 // pred_check_branch
    %11 = sbr.rel (0) target = $region5
  $region4: #{tpu_custom_call.1} parent=0 // pred_region
    _
  $region5: #{tpu_custom_call.1} parent=0 // pred_fallthru
    _
  // Predicated region
  $region6: #{tpu_custom_call.1} parent=0 // pred_check
    _
  $region7: #{tpu_custom_call.1} parent=0 // pred_check_branch
    %13 = sbr.rel (0) target = $region9
  $region8: #{tpu_custom_call.1} parent=0 // pred_region
    _
  $region9: #{tpu_custom_call.1} parent=0 // pred_fallthru
    _
  // Predicated region
  $region10: #{tpu_custom_call.1} parent=0 // pred_check
    _
  $region11: #{tpu_custom_call.1} parent=0 // pred_check_branch
    %15 = sbr.rel (0) target = $region13
  $region12: #{tpu_custom_call.1} parent=0 // pred_region
    _
  $region13: #{tpu_custom_call.1} parent=0 // pred_fallthru
    _
  // Predicated region
  $region14: #{tpu_custom_call.1} parent=0 // pred_check
    _
  $region15: #{tpu_custom_call.1} parent=0 // pred_check_branch
    %17 = sbr.rel (0) target = $region17
  $region16: #{tpu_custom_call.1} parent=0 // pred_region
    _
  $region17: #{tpu_custom_call.1} parent=0 // pred_fallthru
    _
  // Predicated region
  $region18: #{tpu_custom_call.1} parent=0 // pred_check
    _
  $region19: #{tpu_custom_call.1} parent=0 // pred_check_branch
    %19 = sbr.rel (0) target = $region21
  $region20: #{tpu_custom_call.1} parent=0 // pred_region
    _
  $region21: #{tpu_custom_call.1} parent=0 // pred_fallthru
    _
  %v21 = vld [vmem:[%s4] sm:$0x1f]
  %v22 = vld [vmem:[%s3] sm:$0x1]
  %v23 = vadd.f32 %v22, %v21
  %v24 = vpack.c.bf16 %v23, %v23
  %v25 = vld [vmem:[%s2] sm:$0x1]
  %v26 = vld [vmem:[%s1] sm:$0xf]
  %v27 = vld [vmem:[%s1 + $0x4] sm:$0xf]
  %v28 = vld [vmem:[%s1 + $0x8] sm:$0xf]
  %v29 = vld [vmem:[%s1 + $0xc] sm:$0xf]
  %v30 = vld [vmem:[%s1 + $0x10] sm:$0xf]
  %v31 = vld [vmem:[%s1 + $0x14] sm:$0xf]
  %v32 = vld [vmem:[%s1 + $0x18] sm:$0xf]
  %v33 = vld [vmem:[%s1 + $0x1c] sm:$0xf]
  %v34 = vld [vmem:[%s1 + $0x20] sm:$0xf]
  %v35 = vld [vmem:[%s1 + $0x24] sm:$0xf]
  %v36 = vld [vmem:[%s1 + $0x28] sm:$0xf]
  %v37 = vld [vmem:[%s1 + $0x2c] sm:$0xf]
  %v38 = vld [vmem:[%s1 + $0x30] sm:$0xf]
  %v39 = vld [vmem:[%s1 + $0x34] sm:$0xf]
  %v40 = vld [vmem:[%s1 + $0x38] sm:$0xf]
  %v41 = vld [vmem:[%s1 + $0x3c] sm:$0xf]
  %v42 = vld [vmem:[%s1 + $0x40] sm:$0xf]
  %v43 = vld [vmem:[%s1 + $0x44] sm:$0xf]
  %v44 = vld [vmem:[%s1 + $0x48] sm:$0xf]
  %v45 = vld [vmem:[%s1 + $0x4c] sm:$0xf]
  %v46 = vld [vmem:[%s1 + $0x50] sm:$0xf]
  %v47 = vld [vmem:[%s1 + $0x54] sm:$0xf]
  %v48 = vld [vmem:[%s1 + $0x58] sm:$0xf]
  %v49 = vld [vmem:[%s1 + $0x5c] sm:$0xf]
  %v50 = vld [vmem:[%s0] sm:$0xf]
  %v52 = vlaneseq
  %v53 = vshrl.u32 %v52, 7
  %v54 = vsub.s32 0, %v53
  %v55 = vrot.slane %v25, %v54
  %v59 = vunpack.c.l.s4 1983009808
  %v60 = vunpack.c.0.s8 %v59
  %v61 = vlaneseq
  %v62 = vshrl.u32 %v61, 7
  %v63 = vsub.s32 %v60, %v62
  %v64 = vrot.slane %v50, %v63
  %v65 = vcombine.high %v64, %v64
  %v91 = vunpack.c.l.b16 %v26
  %v92 = vunpack.c.l.b16 %v27
  %v93 = vunpack.c.l.b16 %v28
  %v94 = vunpack.c.l.b16 %v29
  %v95 = vunpack.c.l.b16 %v30
  %v96 = vunpack.c.l.b16 %v31
  %v97 = vunpack.c.l.b16 %v32
  %v98 = vunpack.c.l.b16 %v33
  %v99 = vunpack.c.l.b16 %v34
  %v100 = vunpack.c.l.b16 %v35
  %v101 = vunpack.c.l.b16 %v36
  %v102 = vunpack.c.l.b16 %v37
  %v103 = vunpack.c.l.b16 %v38
  %v104 = vunpack.c.l.b16 %v39
  %v105 = vunpack.c.l.b16 %v40
  %v106 = vunpack.c.l.b16 %v41
  %v107 = vunpack.c.l.b16 %v42
  %v108 = vunpack.c.l.b16 %v43
  %v109 = vunpack.c.l.b16 %v44
  %v110 = vunpack.c.l.b16 %v45
  %v111 = vunpack.c.l.b16 %v46
  %v112 = vunpack.c.l.b16 %v47
  %v113 = vunpack.c.l.b16 %v48
  %v114 = vunpack.c.l.b16 %v49
  %v115 = vpack.c.b16 %v92, %v91
  %v116 = vpack.c.b16 %v94, %v93
  %v117 = vpack.c.b16 %v96, %v95
  %v118 = vpack.c.b16 %v98, %v97
  %v119 = vpack.c.b16 %v100, %v99
  %v120 = vpack.c.b16 %v102, %v101
  %v121 = vpack.c.b16 %v104, %v103
  %v122 = vpack.c.b16 %v106, %v105
  %v123 = vpack.c.b16 %v108, %v107
  %v124 = vpack.c.b16 %v110, %v109
  %v125 = vpack.c.b16 %v112, %v111
  %v126 = vpack.c.b16 %v114, %v113
  %vm139 = vcmask 523264
  %v141 = vsel %vm139, %v65, 0
  %143 = vmatprep.subr.bf16.mxu0 0
  %144 = vmatpush1.bf16.msra.mxu0 %v115
  %145 = vmatprep.subr.bf16.mxu0 0
  %146 = vmatpush1.bf16.msra.mxu0 %v116
  %147 = vmatprep.subr.bf16.mxu0 0
  %148 = vmatpush1.bf16.msra.mxu0 %v117
  %149 = vmatprep.subr.bf16.mxu0 0
  %150 = vmatpush1.bf16.msra.mxu0 %v118
  %151 = vmatprep.subr.bf16.mxu0 0
  %152 = vmatpush1.bf16.msra.mxu0 %v119
  %153 = vmatprep.subr.bf16.mxu0 0
  %154 = vmatpush1.bf16.msra.mxu0 %v120
  %155 = vmatprep.subr.bf16.mxu0 0
  %156 = vmatpush1.bf16.msra.mxu0 %v121
  %157 = vmatprep.subr.bf16.mxu0 0
  %158 = vmatpush1.bf16.msra.mxu0 %v122
  %159 = vmatprep.subr.bf16.mxu0 0
  %160 = vmatpush1.bf16.msra.mxu0 %v123
  %161 = vmatprep.subr.bf16.mxu0 0
  %162 = vmatpush1.bf16.msra.mxu0 %v124
  %163 = vmatprep.subr.bf16.mxu0 0
  %164 = vmatpush1.bf16.msra.mxu0 %v125
  %165 = vmatprep.subr.bf16.mxu0 0
  %166 = vmatpush1.bf16.msra.mxu0 %v126
  %167 = vmatprep.subr.bf16.mxu0 0
  %168 = vmatpush1.bf16.msra.mxu0 0
  %169 = vmatprep.subr.bf16.mxu0 0
  %170 = vmatpush1.bf16.msra.mxu0 0
  %171 = vmatprep.subr.bf16.mxu0 0
  %172 = vmatpush1.bf16.msra.mxu0 0
  %173 = vmatprep.subr.bf16.mxu0 0
  %174 = vmatpush1.bf16.msra.mxu0 0
  %175 = vmatprep.mubr.bf16.mxu0 %v141
  %176 = vmatmul.mubr.bf16.gmra.mrb[0].mxu0 %v64
  %v177 = vpop.f32.mrb[0].mxu0
  %v178 = vadd.f32 %v55, %v177
  %v179 = vpop.f32.mrb[0].mxu0
  %v180 = vpop.f32.mrb[0].mxu0
  %v181 = vpop.f32.mrb[0].mxu0
  %182 = vdwg.mxu0
  %vm183 = vcmask 253952
  %vm184 = vsmask.f32 256
  %vm185 = vmand %vm183, %vm184
  %v186 = vld [vmem:[%s5] sm:$0x1]
  %v187 = vsel %vm185, %v24, %v186
  %188 = vst [vmem:[%s5] sm:$0x1] %v187
  %v190 = vrot.slane %v21, 1
  %v192 = vadd.f32 %v178, %v190
  %v193 = vpack.c.bf16 %v192, %v192
  %v195 = vunpack.c.l.b16 %v193
  %v196 = vpack.c.b16 %v195, %v195
  %v198 = vshrl.u32 %v196, 16
  %v200 = vrot.slane %v198, 7
  %v201 = vshll.u32 %v196, 16
  %v203 = vor.u32 %v200, %v201
  %vm205 = vcmask 256000
  %vm206 = vsmask.f32 2306
  %vm207 = vmand %vm205, %vm206
  %v208 = vld [vmem:[%s5] sm:$0x7]
  %v209 = vsel %vm207, %v203, %v208
  %210 = vst [vmem:[%s5] sm:$0x7] %v209
  %s211 = scalar_lea.vmem %s0, 4
  %v212 = vld [vmem:[%s211] sm:$0xf]
  %v215 = vunpack.c.l.s4 1983009808
  %v216 = vunpack.c.0.s8 %v215
  %v217 = vlaneseq
  %v218 = vshrl.u32 %v217, 7
  %v219 = vsub.s32 %v216, %v218
  %v220 = vrot.slane %v212, %v219
  %v221 = vcombine.high %v220, %v220
  %v224 = vsel %vm139, %v221, 0
  %226 = vmatprep.subr.bf16.mxu0 0
  %227 = vmatpush1.bf16.msra.mxu0 %v115
  %228 = vmatprep.subr.bf16.mxu0 0
  %229 = vmatpush1.bf16.msra.mxu0 %v116
  %230 = vmatprep.subr.bf16.mxu0 0
  %231 = vmatpush1.bf16.msra.mxu0 %v117
  %232 = vmatprep.subr.bf16.mxu0 0
  %233 = vmatpush1.bf16.msra.mxu0 %v118
  %234 = vmatprep.subr.bf16.mxu0 0
  %235 = vmatpush1.bf16.msra.mxu0 %v119
  %236 = vmatprep.subr.bf16.mxu0 0
  %237 = vmatpush1.bf16.msra.mxu0 %v120
  %238 = vmatprep.subr.bf16.mxu0 0
  %239 = vmatpush1.bf16.msra.mxu0 %v121
  %240 = vmatprep.subr.bf16.mxu0 0
  %241 = vmatpush1.bf16.msra.mxu0 %v122
  %242 = vmatprep.subr.bf16.mxu0 0
  %243 = vmatpush1.bf16.msra.mxu0 %v123
  %244 = vmatprep.subr.bf16.mxu0 0
  %245 = vmatpush1.bf16.msra.mxu0 %v124
  %246 = vmatprep.subr.bf16.mxu0 0
  %247 = vmatpush1.bf16.msra.mxu0 %v125
  %248 = vmatprep.subr.bf16.mxu0 0
  %249 = vmatpush1.bf16.msra.mxu0 %v126
  %250 = vmatprep.subr.bf16.mxu0 0
  %251 = vmatpush1.bf16.msra.mxu0 0
  %252 = vmatprep.subr.bf16.mxu0 0
  %253 = vmatpush1.bf16.msra.mxu0 0
  %254 = vmatprep.subr.bf16.mxu0 0
  %255 = vmatpush1.bf16.msra.mxu0 0
  %256 = vmatprep.subr.bf16.mxu0 0
  %257 = vmatpush1.bf16.msra.mxu0 0
  %258 = vmatprep.mubr.bf16.mxu0 %v224
  %259 = vmatmul.mubr.bf16.gmra.mrb[0].mxu0 %v220
  %v260 = vpop.f32.mrb[0].mxu0
  %v261 = vadd.f32 %v55, %v260
  %v262 = vpop.f32.mrb[0].mxu0
  %v263 = vpop.f32.mrb[0].mxu0
  %v264 = vpop.f32.mrb[0].mxu0
  %265 = vdwg.mxu0
  %s266 = scalar_lea.vmem %s5, 4
  %v267 = vld [vmem:[%s266] sm:$0x1]
  %v268 = vsel %vm185, %v24, %v267
  %269 = vst [vmem:[%s266] sm:$0x1] %v268
  %v270 = vadd.f32 %v261, %v190
  %v271 = vpack.c.bf16 %v270, %v270
  %v273 = vunpack.c.l.b16 %v271
  %v274 = vpack.c.b16 %v273, %v273
  %v276 = vshrl.u32 %v274, 16
  %v278 = vrot.slane %v276, 7
  %v279 = vshll.u32 %v274, 16
  %v281 = vor.u32 %v278, %v279
  %v283 = vld [vmem:[%s266] sm:$0x7]
  %v284 = vsel %vm207, %v281, %v283
  %285 = vst [vmem:[%s266] sm:$0x7] %v284
  // Predicated region
  $region22: #{tpu_custom_call.1} parent=0 // pred_check
    _
  $region23: #{tpu_custom_call.1} parent=0 // pred_check_branch
    %287 = sbr.rel (0) target = $region25
  $region24: #{tpu_custom_call.1} parent=0 // pred_region
    _
  $region25: #{tpu_custom_call.1} parent=0 // pred_fallthru
    _
  // Predicated region
  $region26: #{tpu_custom_call.1} parent=0 // pred_check
    _
  $region27: #{tpu_custom_call.1} parent=0 // pred_check_branch
    %289 = sbr.rel (0) target = $region29
  $region28: #{tpu_custom_call.1} parent=0 // pred_region
    _
  $region29: #{tpu_custom_call.1} parent=0 // pred_fallthru
    _

</llo_original>
